<compile_context>
chip_gen: v7x
topology: tpu7x:2x2x1
jax: 0.10.0
libtpu: 0.0.40
codegen_flags: <defaults>
</compile_context>

<pallas_src>
import functools
import math

import jax
import jax.numpy as jnp
import numpy as np
from jax.experimental import pallas as pl
from jax.experimental.pallas import tpu as pltpu


def _decor_kernel(x_ref, w_ref, cm_ref, b_ref, a_ref, o_ref, *, H, W, K, C_out):
    # x_ref:  (1, C_in, HW + 2P)  zero-padded flattened input for this batch element
    # w_ref:  (K*K, C_out, C_in)  conv taps, tap t = kh*K + kw
    # cm_ref: (K, 1, HW)          column-validity mask per kw offset (1.0 / 0.0)
    # b_ref:  (C_out, 1)          conv bias
    # a_ref:  (1, C_out, 1)       Agent Bernoulli channel mask for this element
    # o_ref:  (1, C_out, HW)      fused output, already NCHW (channels x flat spatial)
    HW = H * W
    pad = K // 2
    P = pad * (W + 1)

    acc = jnp.zeros((C_out, HW), jnp.float32)
    for kw in range(K):                               # static unroll: column offsets
        dw = kw - pad
        part = jnp.zeros((C_out, HW), jnp.float32)
        for kh in range(K):                           # static unroll: row offsets
            dh = kh - pad
            start = P + dh * W + dw                   # static lane offset of shifted view
            slab = x_ref[0, :, pl.ds(start, HW)]      # (C_in, HW)
            part = part + jnp.dot(w_ref[kh * K + kw], slab,
                                  preferred_element_type=jnp.float32)
        acc = acc + part * cm_ref[kw]                 # zero column-wrapped positions
    acc = jnp.maximum(acc + b_ref[...], 0.0)          # bias + ReLU
    o_ref[0] = (acc * a_ref[0]).astype(o_ref.dtype)   # Agent: I * A (per-channel mask)


def decor_forward(x_nchw, w_oihw, bias, mask_nc):
    """x_nchw: (N, C_in, H, W); w: (C_out, C_in, K, K); bias: (C_out,);
    mask_nc: (N, C_out) Agent Bernoulli mask.  Returns (N, C_out, H, W)."""
    N, C_in, H, W = x_nchw.shape
    C_out, _, K, _ = w_oihw.shape
    HW = H * W
    pad = K // 2
    P = pad * (W + 1)
    taps = K * K

    # Layout plumbing only (all cheap): stay NCHW, flatten spatial, 1-D zero pad.
    x_pad = jnp.pad(x_nchw.reshape(N, C_in, HW), ((0, 0), (0, 0), (P, P)))
    w_t = jnp.transpose(w_oihw, (2, 3, 0, 1)).reshape(taps, C_out, C_in)
    b2 = bias.reshape(C_out, 1)
    a3 = mask_nc.reshape(N, C_out, 1)

    # Column-validity mask per kw offset: 1.0 where 0 <= col + dw < W (host constant).
    cols = np.arange(HW) % W
    cm = np.stack([(cols + (kw - pad) >= 0) & (cols + (kw - pad) < W)
                   for kw in range(K)]).astype(np.float32)
    col_mask = jnp.asarray(cm.reshape(K, 1, HW))

    kernel = functools.partial(_decor_kernel, H=H, W=W, K=K, C_out=C_out)
    out = pl.pallas_call(
        kernel,
        out_shape=jax.ShapeDtypeStruct((N, C_out, HW), jnp.float32),
        grid_spec=pltpu.PrefetchScalarGridSpec(
            num_scalar_prefetch=0,
            grid=(N,),
            in_specs=[
                pl.BlockSpec((1, C_in, HW + 2 * P), lambda n: (n, 0, 0)),
                pl.BlockSpec((taps, C_out, C_in), lambda n: (0, 0, 0)),
                pl.BlockSpec((K, 1, HW), lambda n: (0, 0, 0)),
                pl.BlockSpec((C_out, 1), lambda n: (0, 0)),
                pl.BlockSpec((1, C_out, 1), lambda n: (n, 0, 0)),
            ],
            out_specs=pl.BlockSpec((1, C_out, HW), lambda n: (n, 0, 0)),
        ),
        compiler_params=pltpu.CompilerParams(
            dimension_semantics=("parallel",)),
    )(x_pad, w_t, col_mask, b2, a3)

    return out.reshape(N, C_out, H, W)                # free reshape: already NCHW


if __name__ == "__main__":
    key = jax.random.PRNGKey(0)
    k_x, k_w, k_b, k_a = jax.random.split(key, 4)

    # Target model parsed by DECOR: Sequential(Conv2d(4, 8, 3, padding=1), ReLU())
    # -> DECOR appends Agent(0, num_channels=8) after the ReLU.
    N, C_in, H, W = 2, 4, 16, 16
    C_out, K = 8, 3

    x = jax.random.normal(k_x, (N, C_in, H, W), jnp.float32)

    # Conv2d params, deterministic kaiming-uniform-style init.
    fan_in = C_in * K * K
    bound = 1.0 / math.sqrt(fan_in)
    w = jax.random.uniform(k_w, (C_out, C_in, K, K), jnp.float32, -bound, bound)
    b = jax.random.uniform(k_b, (C_out,), jnp.float32, -bound, bound)

    # Agent forward: S = ones(C)*9.6 ; p = sigmoid(S).expand(N, C) ; A ~ Bernoulli(p)
    S = jnp.ones((C_out,), jnp.float32) * 9.6
    p = jax.nn.sigmoid(jnp.broadcast_to(S, (N, C_out)))
    A = jax.random.bernoulli(k_a, p).astype(jnp.float32)
    # TODO(synk): Agent.Pi and Agent.R are module-state side products (never part of
    # the returned tensor), so they are not computed in the kernel.

    y = jax.block_until_ready(decor_forward(x, w, b, A))

    # plain-JAX reference for sanity
    ref = jax.lax.conv_general_dilated(
        x, w, window_strides=(1, 1), padding="SAME",
        dimension_numbers=("NCHW", "OIHW", "NCHW"))
    ref = jnp.maximum(ref + b.reshape(1, C_out, 1, 1), 0.0) * A.reshape(N, C_out, 1, 1)
    assert y.shape == (N, C_out, H, W)
    assert jnp.allclose(y, ref, atol=1e-4, rtol=1e-4)

    print("KERNEL_OK")
</pallas_src>

<mosaic_0001>
module attributes {stable_mosaic.version = 11 : i64} {
  func.func @_decor_kernel(%arg0: i32, %arg1: memref<1x4x290xf32, #tpu.memory_space<vmem>>, %arg2: memref<9x8x4xf32, #tpu.memory_space<vmem>>, %arg3: memref<3x1x256xf32, #tpu.memory_space<vmem>>, %arg4: memref<8x1xf32, #tpu.memory_space<vmem>>, %arg5: memref<1x8x1xf32, #tpu.memory_space<vmem>>, %arg6: memref<1x8x256xf32, #tpu.memory_space<vmem>>) attributes {dimension_semantics = [#tpu.dimension_semantics<parallel>], iteration_bounds = array<i64: 2>, scalar_prefetch = 0 : i64, scratch_operands = 0 : i64, tpu.core_type = #tpu.core_type<tc>, window_params = [{transform_indices = @transform_0, window_bounds = array<i64: 1, 4, 290>}, {pipeline_mode = #tpu.pipeline_mode<synchronous>, transform_indices = @transform_1, window_bounds = array<i64: 9, 8, 4>}, {pipeline_mode = #tpu.pipeline_mode<synchronous>, transform_indices = @transform_2, window_bounds = array<i64: 3, 1, 256>}, {pipeline_mode = #tpu.pipeline_mode<synchronous>, transform_indices = @transform_3, window_bounds = array<i64: 8, 1>}, {transform_indices = @transform_4, window_bounds = array<i64: 1, 8, 1>}, {transform_indices = @transform_5, window_bounds = array<i64: 1, 8, 256>}]} {
    %cst = arith.constant 0.000000e+00 : f32
    %0 = vector.broadcast %cst : f32 to vector<8x256xf32>
    %cst_0 = arith.constant 0.000000e+00 : f32
    %1 = vector.broadcast %cst_0 : f32 to vector<8x256xf32>
    %c0 = arith.constant 0 : index
    %c0_1 = arith.constant 0 : index
    %c0_2 = arith.constant 0 : index
    %2 = vector.load %arg1[%c0, %c0_1, %c0_2] : memref<1x4x290xf32, #tpu.memory_space<vmem>>, vector<1x4x256xf32>
    %3 = vector.shape_cast %2 : vector<1x4x256xf32> to vector<4x256xf32>
    %c0_3 = arith.constant 0 : index
    %c0_4 = arith.constant 0 : index
    %c0_5 = arith.constant 0 : index
    %4 = vector.load %arg2[%c0_3, %c0_4, %c0_5] : memref<9x8x4xf32, #tpu.memory_space<vmem>>, vector<1x8x4xf32>
    %5 = vector.shape_cast %4 : vector<1x8x4xf32> to vector<8x4xf32>
    %cst_6 = arith.constant dense<0.000000e+00> : vector<8x256xf32>
    %6 = tpu.matmul %5, %3, %cst_6 {dimension_numbers = #tpu.dot_dimension_numbers<[1], [0], [0], [1], [0, 0, 1, 1], [], []>} : vector<8x4xf32>, vector<4x256xf32>, vector<8x256xf32> -> vector<8x256xf32>
    %7 = arith.addf %1, %6 : vector<8x256xf32>
    %c0_7 = arith.constant 0 : index
    %c0_8 = arith.constant 0 : index
    %c16 = arith.constant 16 : index
    %8 = vector.load %arg1[%c0_7, %c0_8, %c16] : memref<1x4x290xf32, #tpu.memory_space<vmem>>, vector<1x4x256xf32>
    %9 = vector.shape_cast %8 : vector<1x4x256xf32> to vector<4x256xf32>
    %c3 = arith.constant 3 : index
    %c0_9 = arith.constant 0 : index
    %c0_10 = arith.constant 0 : index
    %10 = vector.load %arg2[%c3, %c0_9, %c0_10] : memref<9x8x4xf32, #tpu.memory_space<vmem>>, vector<1x8x4xf32>
    %11 = vector.shape_cast %10 : vector<1x8x4xf32> to vector<8x4xf32>
    %cst_11 = arith.constant dense<0.000000e+00> : vector<8x256xf32>
    %12 = tpu.matmul %11, %9, %cst_11 {dimension_numbers = #tpu.dot_dimension_numbers<[1], [0], [0], [1], [0, 0, 1, 1], [], []>} : vector<8x4xf32>, vector<4x256xf32>, vector<8x256xf32> -> vector<8x256xf32>
    %13 = arith.addf %7, %12 : vector<8x256xf32>
    %c0_12 = arith.constant 0 : index
    %c0_13 = arith.constant 0 : index
    %c32 = arith.constant 32 : index
    %14 = vector.load %arg1[%c0_12, %c0_13, %c32] : memref<1x4x290xf32, #tpu.memory_space<vmem>>, vector<1x4x256xf32>
    %15 = vector.shape_cast %14 : vector<1x4x256xf32> to vector<4x256xf32>
    %c6 = arith.constant 6 : index
    %c0_14 = arith.constant 0 : index
    %c0_15 = arith.constant 0 : index
    %16 = vector.load %arg2[%c6, %c0_14, %c0_15] : memref<9x8x4xf32, #tpu.memory_space<vmem>>, vector<1x8x4xf32>
    %17 = vector.shape_cast %16 : vector<1x8x4xf32> to vector<8x4xf32>
    %cst_16 = arith.constant dense<0.000000e+00> : vector<8x256xf32>
    %18 = tpu.matmul %17, %15, %cst_16 {dimension_numbers = #tpu.dot_dimension_numbers<[1], [0], [0], [1], [0, 0, 1, 1], [], []>} : vector<8x4xf32>, vector<4x256xf32>, vector<8x256xf32> -> vector<8x256xf32>
    %19 = arith.addf %13, %18 : vector<8x256xf32>
    %c0_17 = arith.constant 0 : index
    %c0_18 = arith.constant 0 : index
    %c0_19 = arith.constant 0 : index
    %20 = vector.load %arg3[%c0_17, %c0_18, %c0_19] : memref<3x1x256xf32, #tpu.memory_space<vmem>>, vector<1x1x256xf32>
    %21 = vector.shape_cast %20 : vector<1x1x256xf32> to vector<1x256xf32>
    %22 = vector.broadcast %21 : vector<1x256xf32> to vector<8x256xf32>
    %23 = arith.mulf %19, %22 : vector<8x256xf32>
    %24 = arith.addf %0, %23 : vector<8x256xf32>
    %cst_20 = arith.constant 0.000000e+00 : f32
    %25 = vector.broadcast %cst_20 : f32 to vector<8x256xf32>
    %c0_21 = arith.constant 0 : index
    %c0_22 = arith.constant 0 : index
    %c1 = arith.constant 1 : index
    %26 = vector.load %arg1[%c0_21, %c0_22, %c1] : memref<1x4x290xf32, #tpu.memory_space<vmem>>, vector<1x4x256xf32>
    %27 = vector.shape_cast %26 : vector<1x4x256xf32> to vector<4x256xf32>
    %c1_23 = arith.constant 1 : index
    %c0_24 = arith.constant 0 : index
    %c0_25 = arith.constant 0 : index
    %28 = vector.load %arg2[%c1_23, %c0_24, %c0_25] : memref<9x8x4xf32, #tpu.memory_space<vmem>>, vector<1x8x4xf32>
    %29 = vector.shape_cast %28 : vector<1x8x4xf32> to vector<8x4xf32>
    %cst_26 = arith.constant dense<0.000000e+00> : vector<8x256xf32>
    %30 = tpu.matmul %29, %27, %cst_26 {dimension_numbers = #tpu.dot_dimension_numbers<[1], [0], [0], [1], [0, 0, 1, 1], [], []>} : vector<8x4xf32>, vector<4x256xf32>, vector<8x256xf32> -> vector<8x256xf32>
    %31 = arith.addf %25, %30 : vector<8x256xf32>
    %c0_27 = arith.constant 0 : index
    %c0_28 = arith.constant 0 : index
    %c17 = arith.constant 17 : index
    %32 = vector.load %arg1[%c0_27, %c0_28, %c17] : memref<1x4x290xf32, #tpu.memory_space<vmem>>, vector<1x4x256xf32>
    %33 = vector.shape_cast %32 : vector<1x4x256xf32> to vector<4x256xf32>
    %c4 = arith.constant 4 : index
    %c0_29 = arith.constant 0 : index
    %c0_30 = arith.constant 0 : index
    %34 = vector.load %arg2[%c4, %c0_29, %c0_30] : memref<9x8x4xf32, #tpu.memory_space<vmem>>, vector<1x8x4xf32>
    %35 = vector.shape_cast %34 : vector<1x8x4xf32> to vector<8x4xf32>
    %cst_31 = arith.constant dense<0.000000e+00> : vector<8x256xf32>
    %36 = tpu.matmul %35, %33, %cst_31 {dimension_numbers = #tpu.dot_dimension_numbers<[1], [0], [0], [1], [0, 0, 1, 1], [], []>} : vector<8x4xf32>, vector<4x256xf32>, vector<8x256xf32> -> vector<8x256xf32>
    %37 = arith.addf %31, %36 : vector<8x256xf32>
    %c0_32 = arith.constant 0 : index
    %c0_33 = arith.constant 0 : index
    %c33 = arith.constant 33 : index
    %38 = vector.load %arg1[%c0_32, %c0_33, %c33] : memref<1x4x290xf32, #tpu.memory_space<vmem>>, vector<1x4x256xf32>
    %39 = vector.shape_cast %38 : vector<1x4x256xf32> to vector<4x256xf32>
    %c7 = arith.constant 7 : index
    %c0_34 = arith.constant 0 : index
    %c0_35 = arith.constant 0 : index
    %40 = vector.load %arg2[%c7, %c0_34, %c0_35] : memref<9x8x4xf32, #tpu.memory_space<vmem>>, vector<1x8x4xf32>
    %41 = vector.shape_cast %40 : vector<1x8x4xf32> to vector<8x4xf32>
    %cst_36 = arith.constant dense<0.000000e+00> : vector<8x256xf32>
    %42 = tpu.matmul %41, %39, %cst_36 {dimension_numbers = #tpu.dot_dimension_numbers<[1], [0], [0], [1], [0, 0, 1, 1], [], []>} : vector<8x4xf32>, vector<4x256xf32>, vector<8x256xf32> -> vector<8x256xf32>
    %43 = arith.addf %37, %42 : vector<8x256xf32>
    %c1_37 = arith.constant 1 : index
    %c0_38 = arith.constant 0 : index
    %c0_39 = arith.constant 0 : index
    %44 = vector.load %arg3[%c1_37, %c0_38, %c0_39] : memref<3x1x256xf32, #tpu.memory_space<vmem>>, vector<1x1x256xf32>
    %45 = vector.shape_cast %44 : vector<1x1x256xf32> to vector<1x256xf32>
    %46 = vector.broadcast %45 : vector<1x256xf32> to vector<8x256xf32>
    %47 = arith.mulf %43, %46 : vector<8x256xf32>
    %48 = arith.addf %24, %47 : vector<8x256xf32>
    %cst_40 = arith.constant 0.000000e+00 : f32
    %49 = vector.broadcast %cst_40 : f32 to vector<8x256xf32>
    %c0_41 = arith.constant 0 : index
    %c0_42 = arith.constant 0 : index
    %c2 = arith.constant 2 : index
    %50 = vector.load %arg1[%c0_41, %c0_42, %c2] : memref<1x4x290xf32, #tpu.memory_space<vmem>>, vector<1x4x256xf32>
    %51 = vector.shape_cast %50 : vector<1x4x256xf32> to vector<4x256xf32>
    %c2_43 = arith.constant 2 : index
    %c0_44 = arith.constant 0 : index
    %c0_45 = arith.constant 0 : index
    %52 = vector.load %arg2[%c2_43, %c0_44, %c0_45] : memref<9x8x4xf32, #tpu.memory_space<vmem>>, vector<1x8x4xf32>
    %53 = vector.shape_cast %52 : vector<1x8x4xf32> to vector<8x4xf32>
    %cst_46 = arith.constant dense<0.000000e+00> : vector<8x256xf32>
    %54 = tpu.matmul %53, %51, %cst_46 {dimension_numbers = #tpu.dot_dimension_numbers<[1], [0], [0], [1], [0, 0, 1, 1], [], []>} : vector<8x4xf32>, vector<4x256xf32>, vector<8x256xf32> -> vector<8x256xf32>
    %55 = arith.addf %49, %54 : vector<8x256xf32>
    %c0_47 = arith.constant 0 : index
    %c0_48 = arith.constant 0 : index
    %c18 = arith.constant 18 : index
    %56 = vector.load %arg1[%c0_47, %c0_48, %c18] : memref<1x4x290xf32, #tpu.memory_space<vmem>>, vector<1x4x256xf32>
    %57 = vector.shape_cast %56 : vector<1x4x256xf32> to vector<4x256xf32>
    %c5 = arith.constant 5 : index
    %c0_49 = arith.constant 0 : index
    %c0_50 = arith.constant 0 : index
    %58 = vector.load %arg2[%c5, %c0_49, %c0_50] : memref<9x8x4xf32, #tpu.memory_space<vmem>>, vector<1x8x4xf32>
    %59 = vector.shape_cast %58 : vector<1x8x4xf32> to vector<8x4xf32>
    %cst_51 = arith.constant dense<0.000000e+00> : vector<8x256xf32>
    %60 = tpu.matmul %59, %57, %cst_51 {dimension_numbers = #tpu.dot_dimension_numbers<[1], [0], [0], [1], [0, 0, 1, 1], [], []>} : vector<8x4xf32>, vector<4x256xf32>, vector<8x256xf32> -> vector<8x256xf32>
    %61 = arith.addf %55, %60 : vector<8x256xf32>
    %c0_52 = arith.constant 0 : index
    %c0_53 = arith.constant 0 : index
    %c34 = arith.constant 34 : index
    %62 = vector.load %arg1[%c0_52, %c0_53, %c34] : memref<1x4x290xf32, #tpu.memory_space<vmem>>, vector<1x4x256xf32>
    %63 = vector.shape_cast %62 : vector<1x4x256xf32> to vector<4x256xf32>
    %c8 = arith.constant 8 : index
    %c0_54 = arith.constant 0 : index
    %c0_55 = arith.constant 0 : index
    %64 = vector.load %arg2[%c8, %c0_54, %c0_55] : memref<9x8x4xf32, #tpu.memory_space<vmem>>, vector<1x8x4xf32>
    %65 = vector.shape_cast %64 : vector<1x8x4xf32> to vector<8x4xf32>
    %cst_56 = arith.constant dense<0.000000e+00> : vector<8x256xf32>
    %66 = tpu.matmul %65, %63, %cst_56 {dimension_numbers = #tpu.dot_dimension_numbers<[1], [0], [0], [1], [0, 0, 1, 1], [], []>} : vector<8x4xf32>, vector<4x256xf32>, vector<8x256xf32> -> vector<8x256xf32>
    %67 = arith.addf %61, %66 : vector<8x256xf32>
    %c2_57 = arith.constant 2 : index
    %c0_58 = arith.constant 0 : index
    %c0_59 = arith.constant 0 : index
    %68 = vector.load %arg3[%c2_57, %c0_58, %c0_59] : memref<3x1x256xf32, #tpu.memory_space<vmem>>, vector<1x1x256xf32>
    %69 = vector.shape_cast %68 : vector<1x1x256xf32> to vector<1x256xf32>
    %70 = vector.broadcast %69 : vector<1x256xf32> to vector<8x256xf32>
    %71 = arith.mulf %67, %70 : vector<8x256xf32>
    %72 = arith.addf %48, %71 : vector<8x256xf32>
    %c0_60 = arith.constant 0 : index
    %c0_61 = arith.constant 0 : index
    %73 = vector.load %arg4[%c0_60, %c0_61] : memref<8x1xf32, #tpu.memory_space<vmem>>, vector<8x1xf32>
    %74 = vector.broadcast %73 : vector<8x1xf32> to vector<8x256xf32>
    %75 = arith.addf %72, %74 : vector<8x256xf32>
    %cst_62 = arith.constant 0.000000e+00 : f32
    %76 = vector.broadcast %cst_62 : f32 to vector<8x256xf32>
    %77 = arith.maximumf %75, %76 : vector<8x256xf32>
    %c0_63 = arith.constant 0 : index
    %c0_64 = arith.constant 0 : index
    %c0_65 = arith.constant 0 : index
    %78 = vector.load %arg5[%c0_63, %c0_64, %c0_65] : memref<1x8x1xf32, #tpu.memory_space<vmem>>, vector<1x8x1xf32>
    %79 = vector.shape_cast %78 : vector<1x8x1xf32> to vector<8x1xf32>
    %80 = vector.broadcast %79 : vector<8x1xf32> to vector<8x256xf32>
    %81 = arith.mulf %77, %80 : vector<8x256xf32>
    %c0_66 = arith.constant 0 : index
    %c0_67 = arith.constant 0 : index
    %c0_68 = arith.constant 0 : index
    %82 = vector.load %arg6[%c0_66, %c0_67, %c0_68] : memref<1x8x256xf32, #tpu.memory_space<vmem>>, vector<1x8x256xf32>
    %83 = vector.shape_cast %82 : vector<1x8x256xf32> to vector<8x256xf32>
    %84 = vector.shape_cast %81 : vector<8x256xf32> to vector<1x8x256xf32>
    tpu.vector_store %arg6[%c0_66, %c0_67, %c0_68], %84 {strides = array<i32>} : memref<1x8x256xf32, #tpu.memory_space<vmem>>, vector<1x8x256xf32>,
    return
  }
  func.func @transform_0(%arg0: i32) -> (i32, i32, i32) {
    %c0_i32 = arith.constant 0 : i32
    %c0_i32_0 = arith.constant 0 : i32
    %c0_i32_1 = arith.constant 0 : i32
    return %arg0, %c0_i32, %c0_i32_0 : i32, i32, i32
  }
  func.func @transform_1(%arg0: i32) -> (i32, i32, i32) {
    %c0_i32 = arith.constant 0 : i32
    %c0_i32_0 = arith.constant 0 : i32
    %c0_i32_1 = arith.constant 0 : i32
    %c0_i32_2 = arith.constant 0 : i32
    return %c0_i32, %c0_i32_0, %c0_i32_1 : i32, i32, i32
  }
  func.func @transform_2(%arg0: i32) -> (i32, i32, i32) {
    %c0_i32 = arith.constant 0 : i32
    %c0_i32_0 = arith.constant 0 : i32
    %c0_i32_1 = arith.constant 0 : i32
    %c0_i32_2 = arith.constant 0 : i32
    return %c0_i32, %c0_i32_0, %c0_i32_1 : i32, i32, i32
  }
  func.func @transform_3(%arg0: i32) -> (i32, i32) {
    %c0_i32 = arith.constant 0 : i32
    %c0_i32_0 = arith.constant 0 : i32
    %c0_i32_1 = arith.constant 0 : i32
    return %c0_i32, %c0_i32_0 : i32, i32
  }
  func.func @transform_4(%arg0: i32) -> (i32, i32, i32) {
    %c0_i32 = arith.constant 0 : i32
    %c0_i32_0 = arith.constant 0 : i32
    %c0_i32_1 = arith.constant 0 : i32
    return %arg0, %c0_i32, %c0_i32_0 : i32, i32, i32
  }
  func.func @transform_5(%arg0: i32) -> (i32, i32, i32) {
    %c0_i32 = arith.constant 0 : i32
    %c0_i32_0 = arith.constant 0 : i32
    %c0_i32_1 = arith.constant 0 : i32
    return %arg0, %c0_i32, %c0_i32_0 : i32, i32, i32
  }
}

</mosaic_0001>

<llo_original>
// kernel: tpu_custom_call.1
$region0: #{tpu_custom_call.1}
  #allocation0 [shape = 'u32[]', space=smem, size = 0x4, offset = 0x4, fixed_abs, tag = 'smem constant byte address 0x4 - core index']
  #allocation1 [shape = 'u32[144,128]{1,0:T(1,128)}', space=vmem, size = 0x12000, scoped, tag = 'internal scratch']
  %s0 = inlined_call_operand.vmem [shape: f32[2,4,290], index: 0, kind: input, shape index: {}]
  %s1 = inlined_call_operand.vmem [shape: f32[9,8,4], index: 1, kind: input, shape index: {}]
  %s2 = inlined_call_operand.vmem [shape: f32[3,1,256], index: 2, kind: input, shape index: {}]
  %s3 = inlined_call_operand.vmem [shape: f32[8,1], index: 3, kind: input, shape index: {}]
  %s4 = inlined_call_operand.vmem [shape: f32[2,8,1], index: 4, kind: input, shape index: {}]
  %s5 = inlined_call_operand.hbm [shape: f32[2,8,256], index: 5, kind: output, shape index: {}]
  %s6 = sld [smem:[#allocation0]]
  $region53: #{tpu_custom_call.1} parent=0
    _
  %s8 = ssub.s32 1, %s6
  %s9 = scalar_select 0, %s8, %s6
  $region1: #{tpu_custom_call.1} parent=0
    #allocation2 [shape = 'u8[16384]{0}', space=vmem, size = 0x4000, scoped, tag = 'output window, operand 0']
    #allocation3 [shape = 's32[2]{0}', space=sflag, size = 0x8, scoped, tag = 'scoped memory for tpu_custom_call.1']
    %10 = vsyncpa [#allocation3], 0
    %s11 = scalar_lea.sflag [#allocation3], 1
    %12 = vsyncpa %s11, 0
    loop: start=0, step=1, limit=4
    $region2: #{tpu_custom_call.1} parent=1 // loop_pre_header
      _
    $region3: #{tpu_custom_call.1} parent=1 // loop_header
      %s14 = sphi 0, %s18
      %p15 = scmp.ge.s32.totalorder %s14, 4
      %s24 = sphi 0, %s26
      %s27 = sphi 0, %s24
      %s28 = sphi 0, %s27
      %s44 = sphi 0, %s28
      %s48 = sphi 0, %s48
      %s50 = sphi 0, %s48
      %s51 = sphi 0, %s50
      %s65 = sphi 0, %s51
      %s69 = sphi 0, %s69
      %s71 = sphi 0, %s69
      %s72 = sphi 0, %s71
      %s86 = sphi 0, %s72
      %s90 = sphi 0, %s90
      %s92 = sphi 0, %s90
      %s93 = sphi 0, %s92
      %s107 = sphi 0, %s93
      %s113 = sphi 0, %s115
      %s116 = sphi 0, %s113
      %s117 = sphi 0, %s116
      %s133 = sphi 0, %s117
      %s139 = sphi 0, %s141
      %s142 = sphi 0, %s139
      %s143 = sphi 0, %s142
      %s159 = sphi 0, %s143
    $region4: #{tpu_custom_call.1} parent=1 // loop_header_branch
      %17 = sbr.rel (%p15) target = $region8
    $region5: #{tpu_custom_call.1} parent=1 // loop_body
      %s19 = ssub.s32 %s14, 1
      %s20 = ssub.s32 %s14, 2
      %s21 = sadd.s32 %s14, 1
      %s22 = ssub.s32 %s14, %s21
      %p23 = scmp.eq.s32.totalorder %s22, 0
      %s25 = sadd.s32 %s24, 1
      %s26 = scalar_select %p23, %s24, %s25
      %p29 = pneg %p23
      %p30 = scmp.eq.s32.totalorder %s14, 1
      %p31 = por %p29, %p30
      %p32 = scmp.ne.s32.totalorder %s24, %s27
      %p33 = scmp.eq.s32.totalorder %s14, 0
      %p34 = por %p32, %p33
      %p35 = scmp.ne.s32.totalorder %s24, %s27
      %p36 = scmp.eq.s32.totalorder %s19, 1
      %p37 = por %p35, %p36
      %p38 = scmp.ne.s32.totalorder %s27, %s28
      %p39 = scmp.eq.s32.totalorder %s19, 0
      %p40 = por %p38, %p39
      %p41 = scmp.ne.s32.totalorder %s27, %s28
      %p42 = scmp.eq.s32.totalorder %s20, 1
      %p43 = por %p41, %p42
      %p45 = scmp.ne.s32.totalorder %s28, %s44
      %p46 = scmp.eq.s32.totalorder %s20, 0
      %p47 = por %p45, %p46
      %s49 = sadd.s32 %s48, 1
      %p52 = scmp.eq.s32.totalorder %s14, 1
      %p53 = scmp.ne.s32.totalorder %s48, %s50
      %p54 = scmp.eq.s32.totalorder %s14, 0
      %p55 = por %p53, %p54
      %p56 = scmp.ne.s32.totalorder %s48, %s50
      %p57 = scmp.eq.s32.totalorder %s19, 1
      %p58 = por %p56, %p57
      %p59 = scmp.ne.s32.totalorder %s50, %s51
      %p60 = scmp.eq.s32.totalorder %s19, 0
      %p61 = por %p59, %p60
      %p62 = scmp.ne.s32.totalorder %s50, %s51
      %p63 = scmp.eq.s32.totalorder %s20, 1
      %p64 = por %p62, %p63
      %p66 = scmp.ne.s32.totalorder %s51, %s65
      %p67 = scmp.eq.s32.totalorder %s20, 0
      %p68 = por %p66, %p67
      %s70 = sadd.s32 %s69, 1
      %p73 = scmp.eq.s32.totalorder %s14, 1
      %p74 = scmp.ne.s32.totalorder %s69, %s71
      %p75 = scmp.eq.s32.totalorder %s14, 0
      %p76 = por %p74, %p75
      %p77 = scmp.ne.s32.totalorder %s69, %s71
      %p78 = scmp.eq.s32.totalorder %s19, 1
      %p79 = por %p77, %p78
      %p80 = scmp.ne.s32.totalorder %s71, %s72
      %p81 = scmp.eq.s32.totalorder %s19, 0
      %p82 = por %p80, %p81
      %p83 = scmp.ne.s32.totalorder %s71, %s72
      %p84 = scmp.eq.s32.totalorder %s20, 1
      %p85 = por %p83, %p84
      %p87 = scmp.ne.s32.totalorder %s72, %s86
      %p88 = scmp.eq.s32.totalorder %s20, 0
      %p89 = por %p87, %p88
      %s91 = sadd.s32 %s90, 1
      %p94 = scmp.eq.s32.totalorder %s14, 1
      %p95 = scmp.ne.s32.totalorder %s90, %s92
      %p96 = scmp.eq.s32.totalorder %s14, 0
      %p97 = por %p95, %p96
      %p98 = scmp.ne.s32.totalorder %s90, %s92
      %p99 = scmp.eq.s32.totalorder %s19, 1
      %p100 = por %p98, %p99
      %p101 = scmp.ne.s32.totalorder %s92, %s93
      %p102 = scmp.eq.s32.totalorder %s19, 0
      %p103 = por %p101, %p102
      %p104 = scmp.ne.s32.totalorder %s92, %s93
      %p105 = scmp.eq.s32.totalorder %s20, 1
      %p106 = por %p104, %p105
      %p108 = scmp.ne.s32.totalorder %s93, %s107
      %p109 = scmp.eq.s32.totalorder %s20, 0
      %p110 = por %p108, %p109
      %s111 = ssub.s32 %s14, %s21
      %p112 = scmp.eq.s32.totalorder %s111, 0
      %s114 = sadd.s32 %s113, 1
      %s115 = scalar_select %p112, %s113, %s114
      %p118 = pneg %p112
      %p119 = scmp.eq.s32.totalorder %s14, 1
      %p120 = por %p118, %p119
      %p121 = scmp.ne.s32.totalorder %s113, %s116
      %p122 = scmp.eq.s32.totalorder %s14, 0
      %p123 = por %p121, %p122
      %p124 = scmp.ne.s32.totalorder %s113, %s116
      %p125 = scmp.eq.s32.totalorder %s19, 1
      %p126 = por %p124, %p125
      %p127 = scmp.ne.s32.totalorder %s116, %s117
      %p128 = scmp.eq.s32.totalorder %s19, 0
      %p129 = por %p127, %p128
      %p130 = scmp.ne.s32.totalorder %s116, %s117
      %p131 = scmp.eq.s32.totalorder %s20, 1
      %p132 = por %p130, %p131
      %p134 = scmp.ne.s32.totalorder %s117, %s133
      %p135 = scmp.eq.s32.totalorder %s20, 0
      %p136 = por %p134, %p135
      %s137 = ssub.s32 %s14, %s21
      %p138 = scmp.eq.s32.totalorder %s137, 0
      %s140 = sadd.s32 %s139, 1
      %s141 = scalar_select %p138, %s139, %s140
      %p144 = pneg %p138
      %p145 = scmp.eq.s32.totalorder %s14, 1
      %p146 = por %p144, %p145
      %p147 = scmp.ne.s32.totalorder %s139, %s142
      %p148 = scmp.eq.s32.totalorder %s14, 0
      %p149 = por %p147, %p148
      %p150 = scmp.ne.s32.totalorder %s139, %s142
      %p151 = scmp.eq.s32.totalorder %s19, 1
      %p152 = por %p150, %p151
      %p153 = scmp.ne.s32.totalorder %s142, %s143
      %p154 = scmp.eq.s32.totalorder %s19, 0
      %p155 = por %p153, %p154
      %p156 = scmp.ne.s32.totalorder %s142, %s143
      %p157 = scmp.eq.s32.totalorder %s20, 1
      %p158 = por %p156, %p157
      %p160 = scmp.ne.s32.totalorder %s143, %s159
      %p161 = scmp.eq.s32.totalorder %s20, 0
      %p162 = por %p160, %p161
      %p163 = scmp.le.s32.totalorder 1, %s14
      %p164 = scmp.lt.s32.totalorder %s14, 3
      %p165 = pnand %p163, %p164
      %p166 = pneg %p165
      // Predicated region
      $region9: #{tpu_custom_call.1} parent=5 // pred_check
        _
      $region10: #{tpu_custom_call.1} parent=5 // pred_check_branch
        %168 = sbr.rel (%p165) target = $region12
      $region11: #{tpu_custom_call.1} parent=5 // pred_region
        %s169 = ssub.s32 %s14, 1
        // Predicated region
        $region13: #{tpu_custom_call.1} parent=11 // pred_check
          %p170 = pneg %p61
        $region14: #{tpu_custom_call.1} parent=11 // pred_check_branch
          %172 = sbr.rel (%p170) target = $region16
        $region15: #{tpu_custom_call.1} parent=11 // pred_region
          _
        $region16: #{tpu_custom_call.1} parent=11 // pred_fallthru
          _
        // Predicated region
        $region17: #{tpu_custom_call.1} parent=11 // pred_check
          %p173 = pneg %p82
        $region18: #{tpu_custom_call.1} parent=11 // pred_check_branch
          %175 = sbr.rel (%p173) target = $region20
        $region19: #{tpu_custom_call.1} parent=11 // pred_region
          _
        $region20: #{tpu_custom_call.1} parent=11 // pred_fallthru
          _
        // Predicated region
        $region21: #{tpu_custom_call.1} parent=11 // pred_check
          %p176 = pneg %p103
        $region22: #{tpu_custom_call.1} parent=11 // pred_check_branch
          %178 = sbr.rel (%p176) target = $region24
        $region23: #{tpu_custom_call.1} parent=11 // pred_region
          _
        $region24: #{tpu_custom_call.1} parent=11 // pred_fallthru
          _
      $region12: #{tpu_custom_call.1} parent=5 // pred_fallthru
        _
      %p179 = scmp.lt.s32.totalorder %s14, 2
      // Predicated region
      $region25: #{tpu_custom_call.1} parent=5 // pred_check
        %p180 = pneg %p179
      $region26: #{tpu_custom_call.1} parent=5 // pred_check_branch
        %182 = sbr.rel (%p180) target = $region28
      $region27: #{tpu_custom_call.1} parent=5 // pred_region
        // Predicated region
        $region29: #{tpu_custom_call.1} parent=27 // pred_check
          %p183 = pneg %p34
        $region30: #{tpu_custom_call.1} parent=27 // pred_check_branch
          %185 = sbr.rel (%p183) target = $region32
        $region31: #{tpu_custom_call.1} parent=27 // pred_region
          %p186 = scmp.lt.s32.totalorder %s14, 1
          %s187 = scalar_select %p186, %s14, 1
          %s188 = smul.addr %s187, 3
          %s189 = smul.addr %s188, 4
          %s190 = scalar_lea.vmem %s0, %s189
        $region32: #{tpu_custom_call.1} parent=27 // pred_fallthru
          _
        // Predicated region
        $region33: #{tpu_custom_call.1} parent=27 // pred_check
          %p191 = pneg %p123
        $region34: #{tpu_custom_call.1} parent=27 // pred_check_branch
          %193 = sbr.rel (%p191) target = $region36
        $region35: #{tpu_custom_call.1} parent=27 // pred_region
          %p194 = scmp.lt.s32.totalorder %s14, 1
          %s195 = scalar_select %p194, %s14, 1
          %s196 = smul.addr %s195, 8
          %s197 = scalar_lea.vmem %s4, %s196
        $region36: #{tpu_custom_call.1} parent=27 // pred_fallthru
          _
      $region28: #{tpu_custom_call.1} parent=5 // pred_fallthru
        _
      %p198 = scmp.le.s32.totalorder 1, %s14
      %p199 = scmp.lt.s32.totalorder %s14, 3
      %p200 = pnand %p198, %p199
      %p201 = pneg %p200
      // Predicated region
      $region37: #{tpu_custom_call.1} parent=5 // pred_check
        _
      $region38: #{tpu_custom_call.1} parent=5 // pred_check_branch
        %203 = sbr.rel (%p200) target = $region40
      $region39: #{tpu_custom_call.1} parent=5 // pred_region
        %s204 = ssub.s32 %s14, 1
        %p205 = scmp.lt.s32.totalorder %s19, 1
        %s206 = scalar_select %p205, %s19, 1
        %s207 = smul.addr %s206, 3
        %s208 = smul.addr %s207, 4
        %s209 = scalar_lea.vmem %s0, %s208
        %p210 = pneg %p40
        %p211 = pneg %p37
        %p212 = pneg %p61
        %p213 = pneg %p58
        %p214 = pneg %p82
        %p215 = pneg %p79
        %p216 = pneg %p103
        %p217 = pneg %p100
        %p218 = scmp.lt.s32.totalorder %s19, 1
        %s219 = scalar_select %p218, %s19, 1
        %s220 = smul.addr %s219, 8
        %s221 = scalar_lea.vmem %s4, %s220
        %p222 = pneg %p129
        %p223 = pneg %p126
        %p224 = pneg %p155
        %p225 = pneg %p152
        %s226 = sand.u32 %s142, 1
        %s227 = scalar_lea.sflag [#allocation3], %s226
        %s228 = sand.u32 %s142, 1
        %s229 = smul.addr %s228, 16
        %s230 = scalar_lea.vmem [#allocation2], %s229
        %p231 = scmp.lt.s32.totalorder %s19, 1
        %s232 = scalar_select %p231, %s19, 1
        %s233 = smul.addr %s232, 3
        %s234 = smul.addr %s233, 4
        %s235 = scalar_lea.vmem %s0, %s234
        %p236 = scmp.lt.s32.totalorder %s19, 1
        %s237 = scalar_select %p236, %s19, 1
        %s238 = smul.addr %s237, 8
        %s239 = scalar_lea.vmem %s4, %s238
        %v240 = vld [vmem:[%s235] sm:$0xff]
        %v241 = vld [vmem:[%s1] sm:$0xff]
        %v242 = vld [vmem:[%s235 + $0x8] sm:$0xf]
        %s243 = scalar_lea.vmem %s1, 24
        %v244 = vld [vmem:[%s243] sm:$0xff]
        %v247 = vcombine.high %v240, %v240
        %248 = vrot.lane.b32.xlu0 %v240, 112
        %v249 = vpop.permute.xlu0 %248
        %250 = vrot.lane.b32.xlu0 %v247, 112
        %v251 = vpop.permute.xlu0 %250
        %252 = vrot.lane.b32.xlu0 %v242, 112
        %v253 = vpop.permute.xlu0 %252
        %vm254 = vcmask 916480
        %v255 = vsel %vm254, %v249, %v251
        %v256 = vsel %vm254, %v251, %v253
        %vm257 = vcmask 31744
        %v259 = vsel %vm257, %v244, 0
        %vm261 = vcmask 1043456
        %v262 = vsel %vm261, %v255, 0
        %v264 = vsel %vm261, %v256, 0
        %266 = vmatprep.subr.mxu0 %v264
        %267 = vmatpush1.msra.mxu0 %v262
        %268 = vmatprep.subr.mxu0 0.0
        %269 = vmatpush1.msra.mxu0 0.0
        %270 = vmatprep.subr.mxu0 0.0
        %271 = vmatpush1.msra.mxu0 0.0
        %272 = vmatprep.subr.mxu0 0.0
        %273 = vmatpush1.msra.mxu0 0.0
        %274 = vmatprep.subr.mxu0 0.0
        %275 = vmatpush1.msra.mxu0 0.0
        %276 = vmatprep.subr.mxu0 0.0
        %277 = vmatpush1.msra.mxu0 0.0
        %278 = vmatprep.subr.mxu0 0.0
        %279 = vmatpush1.msra.mxu0 0.0
        %280 = vmatprep.subr.mxu0 0.0
        %281 = vmatpush1.msra.mxu0 0.0
        %282 = vmatprep.subr.mxu0 0.0
        %283 = vmatpush1.msra.mxu0 0.0
        %284 = vmatprep.subr.mxu0 0.0
        %285 = vmatpush1.msra.mxu0 0.0
        %286 = vmatprep.subr.mxu0 0.0
        %287 = vmatpush1.msra.mxu0 0.0
        %288 = vmatprep.subr.mxu0 0.0
        %289 = vmatpush1.msra.mxu0 0.0
        %290 = vmatprep.subr.mxu0 0.0
        %291 = vmatpush1.msra.mxu0 0.0
        %292 = vmatprep.subr.mxu0 0.0
        %293 = vmatpush1.msra.mxu0 0.0
        %294 = vmatprep.subr.mxu0 0.0
        %295 = vmatpush1.msra.mxu0 0.0
        %296 = vmatprep.subr.mxu0 0.0
        %297 = vmatpush1.msra.mxu0 0.0
        %298 = vmatprep.subr.mxu0 0.0
        %299 = vmatpush1.msra.mxu0 0.0
        %300 = vmatprep.subr.mxu0 0.0
        %301 = vmatpush1.msra.mxu0 0.0
        %302 = vmatprep.subr.mxu0 0.0
        %303 = vmatpush1.msra.mxu0 0.0
        %304 = vmatprep.subr.mxu0 0.0
        %305 = vmatpush1.msra.mxu0 0.0
        %306 = vmatprep.subr.mxu0 0.0
        %307 = vmatpush1.msra.mxu0 0.0
        %308 = vmatprep.subr.mxu0 0.0
        %309 = vmatpush1.msra.mxu0 0.0
        %310 = vmatprep.subr.mxu0 0.0
        %311 = vmatpush1.msra.mxu0 0.0
        %312 = vmatprep.subr.mxu0 0.0
        %313 = vmatpush1.msra.mxu0 0.0
        %314 = vmatprep.subr.mxu0 0.0
        %315 = vmatpush1.msra.mxu0 0.0
        %316 = vmatprep.subr.mxu0 0.0
        %317 = vmatpush1.msra.mxu0 0.0
        %318 = vmatprep.subr.mxu0 0.0
        %319 = vmatpush1.msra.mxu0 0.0
        %320 = vmatprep.subr.mxu0 0.0
        %321 = vmatpush1.msra.mxu0 0.0
        %322 = vmatprep.subr.mxu0 0.0
        %323 = vmatpush1.msra.mxu0 0.0
        %324 = vmatprep.subr.mxu0 0.0
        %325 = vmatpush1.msra.mxu0 0.0
        %326 = vmatprep.subr.mxu0 0.0
        %327 = vmatpush1.msra.mxu0 0.0
        %328 = vmatprep.subr.mxu0 0.0
        %329 = vmatpush1.msra.mxu0 0.0
        %330 = vmatprep.mubr.f32.mxu0 0.0
        %331 = vmatmul.mubr.f32.gmra.mrb[0].mxu0 %v259
        %v332 = vpop.f32.mrb[0].mxu0
        %v333 = vadd.f32 0.0, %v332
        %v334 = vpop.f32.mrb[0].mxu0
        %v335 = vadd.f32 0.0, %v334
        %336 = vdwg.mxu0
        %v338 = vsel %vm257, %v241, 0
        %v340 = vsel %vm261, %v240, 0
        %v342 = vsel %vm261, %v247, 0
        %344 = vmatprep.subr.mxu0 %v342
        %345 = vmatpush1.msra.mxu0 %v340
        %346 = vmatprep.subr.mxu0 0.0
        %347 = vmatpush1.msra.mxu0 0.0
        %348 = vmatprep.subr.mxu0 0.0
        %349 = vmatpush1.msra.mxu0 0.0
        %350 = vmatprep.subr.mxu0 0.0
        %351 = vmatpush1.msra.mxu0 0.0
        %352 = vmatprep.subr.mxu0 0.0
        %353 = vmatpush1.msra.mxu0 0.0
        %354 = vmatprep.subr.mxu0 0.0
        %355 = vmatpush1.msra.mxu0 0.0
        %356 = vmatprep.subr.mxu0 0.0
        %357 = vmatpush1.msra.mxu0 0.0
        %358 = vmatprep.subr.mxu0 0.0
        %359 = vmatpush1.msra.mxu0 0.0
        %360 = vmatprep.subr.mxu0 0.0
        %361 = vmatpush1.msra.mxu0 0.0
        %362 = vmatprep.subr.mxu0 0.0
        %363 = vmatpush1.msra.mxu0 0.0
        %364 = vmatprep.subr.mxu0 0.0
        %365 = vmatpush1.msra.mxu0 0.0
        %366 = vmatprep.subr.mxu0 0.0
        %367 = vmatpush1.msra.mxu0 0.0
        %368 = vmatprep.subr.mxu0 0.0
        %369 = vmatpush1.msra.mxu0 0.0
        %370 = vmatprep.subr.mxu0 0.0
        %371 = vmatpush1.msra.mxu0 0.0
        %372 = vmatprep.subr.mxu0 0.0
        %373 = vmatpush1.msra.mxu0 0.0
        %374 = vmatprep.subr.mxu0 0.0
        %375 = vmatpush1.msra.mxu0 0.0
        %376 = vmatprep.subr.mxu0 0.0
        %377 = vmatpush1.msra.mxu0 0.0
        %378 = vmatprep.subr.mxu0 0.0
        %379 = vmatpush1.msra.mxu0 0.0
        %380 = vmatprep.subr.mxu0 0.0
        %381 = vmatpush1.msra.mxu0 0.0
        %382 = vmatprep.subr.mxu0 0.0
        %383 = vmatpush1.msra.mxu0 0.0
        %384 = vmatprep.subr.mxu0 0.0
        %385 = vmatpush1.msra.mxu0 0.0
        %386 = vmatprep.subr.mxu0 0.0
        %387 = vmatpush1.msra.mxu0 0.0
        %388 = vmatprep.subr.mxu0 0.0
        %389 = vmatpush1.msra.mxu0 0.0
        %390 = vmatprep.subr.mxu0 0.0
        %391 = vmatpush1.msra.mxu0 0.0
        %392 = vmatprep.subr.mxu0 0.0
        %393 = vmatpush1.msra.mxu0 0.0
        %394 = vmatprep.subr.mxu0 0.0
        %395 = vmatpush1.msra.mxu0 0.0
        %396 = vmatprep.subr.mxu0 0.0
        %397 = vmatpush1.msra.mxu0 0.0
        %398 = vmatprep.subr.mxu0 0.0
        %399 = vmatpush1.msra.mxu0 0.0
        %400 = vmatprep.subr.mxu0 0.0
        %401 = vmatpush1.msra.mxu0 0.0
        %402 = vmatprep.subr.mxu0 0.0
        %403 = vmatpush1.msra.mxu0 0.0
        %404 = vmatprep.subr.mxu0 0.0
        %405 = vmatpush1.msra.mxu0 0.0
        %406 = vmatprep.subr.mxu0 0.0
        %407 = vmatpush1.msra.mxu0 0.0
        %408 = vmatprep.mubr.f32.mxu0 0.0
        %409 = vmatmul.mubr.f32.gmra.mrb[0].mxu0 %v338
        %v410 = vpop.f32.mrb[0].mxu0
        %v411 = vadd.f32 %v333, %v410
        %v412 = vpop.f32.mrb[0].mxu0
        %v413 = vadd.f32 %v335, %v412
        %414 = vdwg.mxu0
        %v415 = vld [vmem:[%s235] sm:$0xff]
        %v416 = vld [vmem:[%s235 + $0x8] sm:$0xf]
        %s417 = scalar_lea.vmem %s1, 48
        %v418 = vld [vmem:[%s417] sm:$0xff]
        %v421 = vcombine.high %v415, %v415
        %422 = vrot.lane.b32.xlu0 %v415, 96
        %v423 = vpop.permute.xlu0 %422
        %424 = vrot.lane.b32.xlu0 %v421, 96
        %v425 = vpop.permute.xlu0 %424
        %426 = vrot.lane.b32.xlu0 %v416, 96
        %v427 = vpop.permute.xlu0 %426
        %vm428 = vcmask 785408
        %v429 = vsel %vm428, %v423, %v425
        %v430 = vsel %vm428, %v425, %v427
        %v432 = vsel %vm257, %v418, 0
        %v434 = vsel %vm261, %v429, 0
        %v436 = vsel %vm261, %v430, 0
        %438 = vmatprep.subr.mxu0 %v436
        %439 = vmatpush1.msra.mxu0 %v434
        %440 = vmatprep.subr.mxu0 0.0
        %441 = vmatpush1.msra.mxu0 0.0
        %442 = vmatprep.subr.mxu0 0.0
        %443 = vmatpush1.msra.mxu0 0.0
        %444 = vmatprep.subr.mxu0 0.0
        %445 = vmatpush1.msra.mxu0 0.0
        %446 = vmatprep.subr.mxu0 0.0
        %447 = vmatpush1.msra.mxu0 0.0
        %448 = vmatprep.subr.mxu0 0.0
        %449 = vmatpush1.msra.mxu0 0.0
        %450 = vmatprep.subr.mxu0 0.0
        %451 = vmatpush1.msra.mxu0 0.0
        %452 = vmatprep.subr.mxu0 0.0
        %453 = vmatpush1.msra.mxu0 0.0
        %454 = vmatprep.subr.mxu0 0.0
        %455 = vmatpush1.msra.mxu0 0.0
        %456 = vmatprep.subr.mxu0 0.0
        %457 = vmatpush1.msra.mxu0 0.0
        %458 = vmatprep.subr.mxu0 0.0
        %459 = vmatpush1.msra.mxu0 0.0
        %460 = vmatprep.subr.mxu0 0.0
        %461 = vmatpush1.msra.mxu0 0.0
        %462 = vmatprep.subr.mxu0 0.0
        %463 = vmatpush1.msra.mxu0 0.0
        %464 = vmatprep.subr.mxu0 0.0
        %465 = vmatpush1.msra.mxu0 0.0
        %466 = vmatprep.subr.mxu0 0.0
        %467 = vmatpush1.msra.mxu0 0.0
        %468 = vmatprep.subr.mxu0 0.0
        %469 = vmatpush1.msra.mxu0 0.0
        %470 = vmatprep.subr.mxu0 0.0
        %471 = vmatpush1.msra.mxu0 0.0
        %472 = vmatprep.subr.mxu0 0.0
        %473 = vmatpush1.msra.mxu0 0.0
        %474 = vmatprep.subr.mxu0 0.0
        %475 = vmatpush1.msra.mxu0 0.0
        %476 = vmatprep.subr.mxu0 0.0
        %477 = vmatpush1.msra.mxu0 0.0
        %478 = vmatprep.subr.mxu0 0.0
        %479 = vmatpush1.msra.mxu0 0.0
        %480 = vmatprep.subr.mxu0 0.0
        %481 = vmatpush1.msra.mxu0 0.0
        %482 = vmatprep.subr.mxu0 0.0
        %483 = vmatpush1.msra.mxu0 0.0
        %484 = vmatprep.subr.mxu0 0.0
        %485 = vmatpush1.msra.mxu0 0.0
        %486 = vmatprep.subr.mxu0 0.0
        %487 = vmatpush1.msra.mxu0 0.0
        %488 = vmatprep.subr.mxu0 0.0
        %489 = vmatpush1.msra.mxu0 0.0
        %490 = vmatprep.subr.mxu0 0.0
        %491 = vmatpush1.msra.mxu0 0.0
        %492 = vmatprep.subr.mxu0 0.0
        %493 = vmatpush1.msra.mxu0 0.0
        %494 = vmatprep.subr.mxu0 0.0
        %495 = vmatpush1.msra.mxu0 0.0
        %496 = vmatprep.subr.mxu0 0.0
        %497 = vmatpush1.msra.mxu0 0.0
        %498 = vmatprep.subr.mxu0 0.0
        %499 = vmatpush1.msra.mxu0 0.0
        %500 = vmatprep.subr.mxu0 0.0
        %501 = vmatpush1.msra.mxu0 0.0
        %502 = vmatprep.mubr.f32.mxu0 0.0
        %503 = vmatmul.mubr.f32.gmra.mrb[0].mxu0 %v432
        %v504 = vpop.f32.mrb[0].mxu0
        %v505 = vadd.f32 0.0, %v504
        %v506 = vpop.f32.mrb[0].mxu0
        %v507 = vadd.f32 0.0, %v506
        %508 = vdwg.mxu0
        %v509 = vadd.f32 %v411, %v505
        %v510 = vadd.f32 %v413, %v507
        %v511 = vld [vmem:[%s2] sm:$0x3]
        %v513 = vlaneseq
        %v514 = vshrl.u32 %v513, 7
        %v515 = vsub.s32 0, %v514
        %v516 = vrot.slane %v511, %v515
        %v517 = vlaneseq
        %v518 = vshrl.u32 %v517, 7
        %v519 = vsub.s32 1, %v518
        %v520 = vrot.slane %v511, %v519
        %v523 = vmul.f32 %v509, %v516
        %v524 = vmul.f32 %v510, %v520
        %v525 = vadd.f32 %v523, 0.0
        %v526 = vadd.f32 %v524, 0.0
        %v527 = vld [vmem:[%s235] sm:$0xff]
        %v528 = vld [vmem:[%s235 + $0x8] sm:$0xf]
        %s529 = scalar_lea.vmem %s1, 8
        %v530 = vld [vmem:[%s529] sm:$0xff]
        %s531 = scalar_lea.vmem %s1, 32
        %v532 = vld [vmem:[%s531] sm:$0xff]
        %v535 = vcombine.high %v527, %v527
        %536 = vrot.lane.b32.xlu0 %v527, 111
        %v537 = vpop.permute.xlu0 %536
        %538 = vrot.lane.b32.xlu0 %v535, 111
        %v539 = vpop.permute.xlu0 %538
        %540 = vrot.lane.b32.xlu0 %v528, 111
        %v541 = vpop.permute.xlu0 %540
        %vm542 = vcmask 908288
        %v543 = vsel %vm542, %v537, %v539
        %v544 = vsel %vm542, %v539, %v541
        %v546 = vsel %vm257, %v532, 0
        %v548 = vsel %vm261, %v543, 0
        %v550 = vsel %vm261, %v544, 0
        %552 = vmatprep.subr.mxu0 %v550
        %553 = vmatpush1.msra.mxu0 %v548
        %554 = vmatprep.subr.mxu0 0.0
        %555 = vmatpush1.msra.mxu0 0.0
        %556 = vmatprep.subr.mxu0 0.0
        %557 = vmatpush1.msra.mxu0 0.0
        %558 = vmatprep.subr.mxu0 0.0
        %559 = vmatpush1.msra.mxu0 0.0
        %560 = vmatprep.subr.mxu0 0.0
        %561 = vmatpush1.msra.mxu0 0.0
        %562 = vmatprep.subr.mxu0 0.0
        %563 = vmatpush1.msra.mxu0 0.0
        %564 = vmatprep.subr.mxu0 0.0
        %565 = vmatpush1.msra.mxu0 0.0
        %566 = vmatprep.subr.mxu0 0.0
        %567 = vmatpush1.msra.mxu0 0.0
        %568 = vmatprep.subr.mxu0 0.0
        %569 = vmatpush1.msra.mxu0 0.0
        %570 = vmatprep.subr.mxu0 0.0
        %571 = vmatpush1.msra.mxu0 0.0
        %572 = vmatprep.subr.mxu0 0.0
        %573 = vmatpush1.msra.mxu0 0.0
        %574 = vmatprep.subr.mxu0 0.0
        %575 = vmatpush1.msra.mxu0 0.0
        %576 = vmatprep.subr.mxu0 0.0
        %577 = vmatpush1.msra.mxu0 0.0
        %578 = vmatprep.subr.mxu0 0.0
        %579 = vmatpush1.msra.mxu0 0.0
        %580 = vmatprep.subr.mxu0 0.0
        %581 = vmatpush1.msra.mxu0 0.0
        %582 = vmatprep.subr.mxu0 0.0
        %583 = vmatpush1.msra.mxu0 0.0
        %584 = vmatprep.subr.mxu0 0.0
        %585 = vmatpush1.msra.mxu0 0.0
        %586 = vmatprep.subr.mxu0 0.0
        %587 = vmatpush1.msra.mxu0 0.0
        %588 = vmatprep.subr.mxu0 0.0
        %589 = vmatpush1.msra.mxu0 0.0
        %590 = vmatprep.subr.mxu0 0.0
        %591 = vmatpush1.msra.mxu0 0.0
        %592 = vmatprep.subr.mxu0 0.0
        %593 = vmatpush1.msra.mxu0 0.0
        %594 = vmatprep.subr.mxu0 0.0
        %595 = vmatpush1.msra.mxu0 0.0
        %596 = vmatprep.subr.mxu0 0.0
        %597 = vmatpush1.msra.mxu0 0.0
        %598 = vmatprep.subr.mxu0 0.0
        %599 = vmatpush1.msra.mxu0 0.0
        %600 = vmatprep.subr.mxu0 0.0
        %601 = vmatpush1.msra.mxu0 0.0
        %602 = vmatprep.subr.mxu0 0.0
        %603 = vmatpush1.msra.mxu0 0.0
        %604 = vmatprep.subr.mxu0 0.0
        %605 = vmatpush1.msra.mxu0 0.0
        %606 = vmatprep.subr.mxu0 0.0
        %607 = vmatpush1.msra.mxu0 0.0
        %608 = vmatprep.subr.mxu0 0.0
        %609 = vmatpush1.msra.mxu0 0.0
        %610 = vmatprep.subr.mxu0 0.0
        %611 = vmatpush1.msra.mxu0 0.0
        %612 = vmatprep.subr.mxu0 0.0
        %613 = vmatpush1.msra.mxu0 0.0
        %614 = vmatprep.subr.mxu0 0.0
        %615 = vmatpush1.msra.mxu0 0.0
        %616 = vmatprep.mubr.f32.mxu0 0.0
        %617 = vmatmul.mubr.f32.gmra.mrb[0].mxu0 %v546
        %v618 = vpop.f32.mrb[0].mxu0
        %v619 = vadd.f32 0.0, %v618
        %v620 = vpop.f32.mrb[0].mxu0
        %v621 = vadd.f32 0.0, %v620
        %622 = vdwg.mxu0
        %623 = vrot.lane.b32.xlu0 %v527, 127
        %v624 = vpop.permute.xlu0 %623
        %625 = vrot.lane.b32.xlu0 %v535, 127
        %v626 = vpop.permute.xlu0 %625
        %627 = vrot.lane.b32.xlu0 %v528, 127
        %v628 = vpop.permute.xlu0 %627
        %vm629 = vcmask 1039360
        %v630 = vsel %vm629, %v624, %v626
        %v631 = vsel %vm629, %v626, %v628
        %v633 = vsel %vm257, %v530, 0
        %v635 = vsel %vm261, %v630, 0
        %v637 = vsel %vm261, %v631, 0
        %639 = vmatprep.subr.mxu0 %v637
        %640 = vmatpush1.msra.mxu0 %v635
        %641 = vmatprep.subr.mxu0 0.0
        %642 = vmatpush1.msra.mxu0 0.0
        %643 = vmatprep.subr.mxu0 0.0
        %644 = vmatpush1.msra.mxu0 0.0
        %645 = vmatprep.subr.mxu0 0.0
        %646 = vmatpush1.msra.mxu0 0.0
        %647 = vmatprep.subr.mxu0 0.0
        %648 = vmatpush1.msra.mxu0 0.0
        %649 = vmatprep.subr.mxu0 0.0
        %650 = vmatpush1.msra.mxu0 0.0
        %651 = vmatprep.subr.mxu0 0.0
        %652 = vmatpush1.msra.mxu0 0.0
        %653 = vmatprep.subr.mxu0 0.0
        %654 = vmatpush1.msra.mxu0 0.0
        %655 = vmatprep.subr.mxu0 0.0
        %656 = vmatpush1.msra.mxu0 0.0
        %657 = vmatprep.subr.mxu0 0.0
        %658 = vmatpush1.msra.mxu0 0.0
        %659 = vmatprep.subr.mxu0 0.0
        %660 = vmatpush1.msra.mxu0 0.0
        %661 = vmatprep.subr.mxu0 0.0
        %662 = vmatpush1.msra.mxu0 0.0
        %663 = vmatprep.subr.mxu0 0.0
        %664 = vmatpush1.msra.mxu0 0.0
        %665 = vmatprep.subr.mxu0 0.0
        %666 = vmatpush1.msra.mxu0 0.0
        %667 = vmatprep.subr.mxu0 0.0
        %668 = vmatpush1.msra.mxu0 0.0
        %669 = vmatprep.subr.mxu0 0.0
        %670 = vmatpush1.msra.mxu0 0.0
        %671 = vmatprep.subr.mxu0 0.0
        %672 = vmatpush1.msra.mxu0 0.0
        %673 = vmatprep.subr.mxu0 0.0
        %674 = vmatpush1.msra.mxu0 0.0
        %675 = vmatprep.subr.mxu0 0.0
        %676 = vmatpush1.msra.mxu0 0.0
        %677 = vmatprep.subr.mxu0 0.0
        %678 = vmatpush1.msra.mxu0 0.0
        %679 = vmatprep.subr.mxu0 0.0
        %680 = vmatpush1.msra.mxu0 0.0
        %681 = vmatprep.subr.mxu0 0.0
        %682 = vmatpush1.msra.mxu0 0.0
        %683 = vmatprep.subr.mxu0 0.0
        %684 = vmatpush1.msra.mxu0 0.0
        %685 = vmatprep.subr.mxu0 0.0
        %686 = vmatpush1.msra.mxu0 0.0
        %687 = vmatprep.subr.mxu0 0.0
        %688 = vmatpush1.msra.mxu0 0.0
        %689 = vmatprep.subr.mxu0 0.0
        %690 = vmatpush1.msra.mxu0 0.0
        %691 = vmatprep.subr.mxu0 0.0
        %692 = vmatpush1.msra.mxu0 0.0
        %693 = vmatprep.subr.mxu0 0.0
        %694 = vmatpush1.msra.mxu0 0.0
        %695 = vmatprep.subr.mxu0 0.0
        %696 = vmatpush1.msra.mxu0 0.0
        %697 = vmatprep.subr.mxu0 0.0
        %698 = vmatpush1.msra.mxu0 0.0
        %699 = vmatprep.subr.mxu0 0.0
        %700 = vmatpush1.msra.mxu0 0.0
        %701 = vmatprep.subr.mxu0 0.0
        %702 = vmatpush1.msra.mxu0 0.0
        %703 = vmatprep.mubr.f32.mxu0 0.0
        %704 = vmatmul.mubr.f32.gmra.mrb[0].mxu0 %v633
        %v705 = vpop.f32.mrb[0].mxu0
        %v706 = vadd.f32 %v619, %v705
        %v707 = vpop.f32.mrb[0].mxu0
        %v708 = vadd.f32 %v621, %v707
        %709 = vdwg.mxu0
        %v710 = vld [vmem:[%s235] sm:$0xff]
        %v711 = vld [vmem:[%s235 + $0x8] sm:$0xf]
        %s712 = scalar_lea.vmem %s1, 56
        %v713 = vld [vmem:[%s712] sm:$0xff]
        %v716 = vcombine.high %v710, %v710
        %717 = vrot.lane.b32.xlu0 %v710, 95
        %v718 = vpop.permute.xlu0 %717
        %719 = vrot.lane.b32.xlu0 %v716, 95
        %v720 = vpop.permute.xlu0 %719
        %721 = vrot.lane.b32.xlu0 %v711, 95
        %v722 = vpop.permute.xlu0 %721
        %vm723 = vcmask 777216
        %v724 = vsel %vm723, %v718, %v720
        %v725 = vsel %vm723, %v720, %v722
        %v727 = vsel %vm257, %v713, 0
        %v729 = vsel %vm261, %v724, 0
        %v731 = vsel %vm261, %v725, 0
        %733 = vmatprep.subr.mxu0 %v731
        %734 = vmatpush1.msra.mxu0 %v729
        %735 = vmatprep.subr.mxu0 0.0
        %736 = vmatpush1.msra.mxu0 0.0
        %737 = vmatprep.subr.mxu0 0.0
        %738 = vmatpush1.msra.mxu0 0.0
        %739 = vmatprep.subr.mxu0 0.0
        %740 = vmatpush1.msra.mxu0 0.0
        %741 = vmatprep.subr.mxu0 0.0
        %742 = vmatpush1.msra.mxu0 0.0
        %743 = vmatprep.subr.mxu0 0.0
        %744 = vmatpush1.msra.mxu0 0.0
        %745 = vmatprep.subr.mxu0 0.0
        %746 = vmatpush1.msra.mxu0 0.0
        %747 = vmatprep.subr.mxu0 0.0
        %748 = vmatpush1.msra.mxu0 0.0
        %749 = vmatprep.subr.mxu0 0.0
        %750 = vmatpush1.msra.mxu0 0.0
        %751 = vmatprep.subr.mxu0 0.0
        %752 = vmatpush1.msra.mxu0 0.0
        %753 = vmatprep.subr.mxu0 0.0
        %754 = vmatpush1.msra.mxu0 0.0
        %755 = vmatprep.subr.mxu0 0.0
        %756 = vmatpush1.msra.mxu0 0.0
        %757 = vmatprep.subr.mxu0 0.0
        %758 = vmatpush1.msra.mxu0 0.0
        %759 = vmatprep.subr.mxu0 0.0
        %760 = vmatpush1.msra.mxu0 0.0
        %761 = vmatprep.subr.mxu0 0.0
        %762 = vmatpush1.msra.mxu0 0.0
        %763 = vmatprep.subr.mxu0 0.0
        %764 = vmatpush1.msra.mxu0 0.0
        %765 = vmatprep.subr.mxu0 0.0
        %766 = vmatpush1.msra.mxu0 0.0
        %767 = vmatprep.subr.mxu0 0.0
        %768 = vmatpush1.msra.mxu0 0.0
        %769 = vmatprep.subr.mxu0 0.0
        %770 = vmatpush1.msra.mxu0 0.0
        %771 = vmatprep.subr.mxu0 0.0
        %772 = vmatpush1.msra.mxu0 0.0
        %773 = vmatprep.subr.mxu0 0.0
        %774 = vmatpush1.msra.mxu0 0.0
        %775 = vmatprep.subr.mxu0 0.0
        %776 = vmatpush1.msra.mxu0 0.0
        %777 = vmatprep.subr.mxu0 0.0
        %778 = vmatpush1.msra.mxu0 0.0
        %779 = vmatprep.subr.mxu0 0.0
        %780 = vmatpush1.msra.mxu0 0.0
        %781 = vmatprep.subr.mxu0 0.0
        %782 = vmatpush1.msra.mxu0 0.0
        %783 = vmatprep.subr.mxu0 0.0
        %784 = vmatpush1.msra.mxu0 0.0
        %785 = vmatprep.subr.mxu0 0.0
        %786 = vmatpush1.msra.mxu0 0.0
        %787 = vmatprep.subr.mxu0 0.0
        %788 = vmatpush1.msra.mxu0 0.0
        %789 = vmatprep.subr.mxu0 0.0
        %790 = vmatpush1.msra.mxu0 0.0
        %791 = vmatprep.subr.mxu0 0.0
        %792 = vmatpush1.msra.mxu0 0.0
        %793 = vmatprep.subr.mxu0 0.0
        %794 = vmatpush1.msra.mxu0 0.0
        %795 = vmatprep.subr.mxu0 0.0
        %796 = vmatpush1.msra.mxu0 0.0
        %797 = vmatprep.mubr.f32.mxu0 0.0
        %798 = vmatmul.mubr.f32.gmra.mrb[0].mxu0 %v727
        %v799 = vpop.f32.mrb[0].mxu0
        %v800 = vadd.f32 0.0, %v799
        %v801 = vpop.f32.mrb[0].mxu0
        %v802 = vadd.f32 0.0, %v801
        %803 = vdwg.mxu0
        %v804 = vadd.f32 %v706, %v800
        %v805 = vadd.f32 %v708, %v802
        %s806 = scalar_lea.vmem %s2, 2
        %v807 = vld [vmem:[%s806] sm:$0x3]
        %v809 = vlaneseq
        %v810 = vshrl.u32 %v809, 7
        %v811 = vsub.s32 0, %v810
        %v812 = vrot.slane %v807, %v811
        %v813 = vlaneseq
        %v814 = vshrl.u32 %v813, 7
        %v815 = vsub.s32 1, %v814
        %v816 = vrot.slane %v807, %v815
        %v819 = vmul.f32 %v804, %v812
        %v820 = vmul.f32 %v805, %v816
        %v821 = vadd.f32 %v525, %v819
        %v822 = vadd.f32 %v526, %v820
        %v823 = vld [vmem:[%s235] sm:$0xff]
        %v824 = vld [vmem:[%s235 + $0x8] sm:$0xf]
        %s825 = scalar_lea.vmem %s1, 16
        %v826 = vld [vmem:[%s825] sm:$0xff]
        %s827 = scalar_lea.vmem %s1, 40
        %v828 = vld [vmem:[%s827] sm:$0xff]
        %v831 = vcombine.high %v823, %v823
        %832 = vrot.lane.b32.xlu0 %v823, 110
        %v833 = vpop.permute.xlu0 %832
        %834 = vrot.lane.b32.xlu0 %v831, 110
        %v835 = vpop.permute.xlu0 %834
        %836 = vrot.lane.b32.xlu0 %v824, 110
        %v837 = vpop.permute.xlu0 %836
        %vm838 = vcmask 900096
        %v839 = vsel %vm838, %v833, %v835
        %v840 = vsel %vm838, %v835, %v837
        %v842 = vsel %vm257, %v828, 0
        %v844 = vsel %vm261, %v839, 0
        %v846 = vsel %vm261, %v840, 0
        %848 = vmatprep.subr.mxu0 %v846
        %849 = vmatpush1.msra.mxu0 %v844
        %850 = vmatprep.subr.mxu0 0.0
        %851 = vmatpush1.msra.mxu0 0.0
        %852 = vmatprep.subr.mxu0 0.0
        %853 = vmatpush1.msra.mxu0 0.0
        %854 = vmatprep.subr.mxu0 0.0
        %855 = vmatpush1.msra.mxu0 0.0
        %856 = vmatprep.subr.mxu0 0.0
        %857 = vmatpush1.msra.mxu0 0.0
        %858 = vmatprep.subr.mxu0 0.0
        %859 = vmatpush1.msra.mxu0 0.0
        %860 = vmatprep.subr.mxu0 0.0
        %861 = vmatpush1.msra.mxu0 0.0
        %862 = vmatprep.subr.mxu0 0.0
        %863 = vmatpush1.msra.mxu0 0.0
        %864 = vmatprep.subr.mxu0 0.0
        %865 = vmatpush1.msra.mxu0 0.0
        %866 = vmatprep.subr.mxu0 0.0
        %867 = vmatpush1.msra.mxu0 0.0
        %868 = vmatprep.subr.mxu0 0.0
        %869 = vmatpush1.msra.mxu0 0.0
        %870 = vmatprep.subr.mxu0 0.0
        %871 = vmatpush1.msra.mxu0 0.0
        %872 = vmatprep.subr.mxu0 0.0
        %873 = vmatpush1.msra.mxu0 0.0
        %874 = vmatprep.subr.mxu0 0.0
        %875 = vmatpush1.msra.mxu0 0.0
        %876 = vmatprep.subr.mxu0 0.0
        %877 = vmatpush1.msra.mxu0 0.0
        %878 = vmatprep.subr.mxu0 0.0
        %879 = vmatpush1.msra.mxu0 0.0
        %880 = vmatprep.subr.mxu0 0.0
        %881 = vmatpush1.msra.mxu0 0.0
        %882 = vmatprep.subr.mxu0 0.0
        %883 = vmatpush1.msra.mxu0 0.0
        %884 = vmatprep.subr.mxu0 0.0
        %885 = vmatpush1.msra.mxu0 0.0
        %886 = vmatprep.subr.mxu0 0.0
        %887 = vmatpush1.msra.mxu0 0.0
        %888 = vmatprep.subr.mxu0 0.0
        %889 = vmatpush1.msra.mxu0 0.0
        %890 = vmatprep.subr.mxu0 0.0
        %891 = vmatpush1.msra.mxu0 0.0
        %892 = vmatprep.subr.mxu0 0.0
        %893 = vmatpush1.msra.mxu0 0.0
        %894 = vmatprep.subr.mxu0 0.0
        %895 = vmatpush1.msra.mxu0 0.0
        %896 = vmatprep.subr.mxu0 0.0
        %897 = vmatpush1.msra.mxu0 0.0
        %898 = vmatprep.subr.mxu0 0.0
        %899 = vmatpush1.msra.mxu0 0.0
        %900 = vmatprep.subr.mxu0 0.0
        %901 = vmatpush1.msra.mxu0 0.0
        %902 = vmatprep.subr.mxu0 0.0
        %903 = vmatpush1.msra.mxu0 0.0
        %904 = vmatprep.subr.mxu0 0.0
        %905 = vmatpush1.msra.mxu0 0.0
        %906 = vmatprep.subr.mxu0 0.0
        %907 = vmatpush1.msra.mxu0 0.0
        %908 = vmatprep.subr.mxu0 0.0
        %909 = vmatpush1.msra.mxu0 0.0
        %910 = vmatprep.subr.mxu0 0.0
        %911 = vmatpush1.msra.mxu0 0.0
        %912 = vmatprep.mubr.f32.mxu0 0.0
        %913 = vmatmul.mubr.f32.gmra.mrb[0].mxu0 %v842
        %v914 = vpop.f32.mrb[0].mxu0
        %v915 = vadd.f32 0.0, %v914
        %v916 = vpop.f32.mrb[0].mxu0
        %v917 = vadd.f32 0.0, %v916
        %918 = vdwg.mxu0
        %919 = vrot.lane.b32.xlu0 %v823, 126
        %v920 = vpop.permute.xlu0 %919
        %921 = vrot.lane.b32.xlu0 %v831, 126
        %v922 = vpop.permute.xlu0 %921
        %923 = vrot.lane.b32.xlu0 %v824, 126
        %v924 = vpop.permute.xlu0 %923
        %vm925 = vcmask 1031168
        %v926 = vsel %vm925, %v920, %v922
        %v927 = vsel %vm925, %v922, %v924
        %v929 = vsel %vm257, %v826, 0
        %v931 = vsel %vm261, %v926, 0
        %v933 = vsel %vm261, %v927, 0
        %935 = vmatprep.subr.mxu0 %v933
        %936 = vmatpush1.msra.mxu0 %v931
        %937 = vmatprep.subr.mxu0 0.0
        %938 = vmatpush1.msra.mxu0 0.0
        %939 = vmatprep.subr.mxu0 0.0
        %940 = vmatpush1.msra.mxu0 0.0
        %941 = vmatprep.subr.mxu0 0.0
        %942 = vmatpush1.msra.mxu0 0.0
        %943 = vmatprep.subr.mxu0 0.0
        %944 = vmatpush1.msra.mxu0 0.0
        %945 = vmatprep.subr.mxu0 0.0
        %946 = vmatpush1.msra.mxu0 0.0
        %947 = vmatprep.subr.mxu0 0.0
        %948 = vmatpush1.msra.mxu0 0.0
        %949 = vmatprep.subr.mxu0 0.0
        %950 = vmatpush1.msra.mxu0 0.0
        %951 = vmatprep.subr.mxu0 0.0
        %952 = vmatpush1.msra.mxu0 0.0
        %953 = vmatprep.subr.mxu0 0.0
        %954 = vmatpush1.msra.mxu0 0.0
        %955 = vmatprep.subr.mxu0 0.0
        %956 = vmatpush1.msra.mxu0 0.0
        %957 = vmatprep.subr.mxu0 0.0
        %958 = vmatpush1.msra.mxu0 0.0
        %959 = vmatprep.subr.mxu0 0.0
        %960 = vmatpush1.msra.mxu0 0.0
        %961 = vmatprep.subr.mxu0 0.0
        %962 = vmatpush1.msra.mxu0 0.0
        %963 = vmatprep.subr.mxu0 0.0
        %964 = vmatpush1.msra.mxu0 0.0
        %965 = vmatprep.subr.mxu0 0.0
        %966 = vmatpush1.msra.mxu0 0.0
        %967 = vmatprep.subr.mxu0 0.0
        %968 = vmatpush1.msra.mxu0 0.0
        %969 = vmatprep.subr.mxu0 0.0
        %970 = vmatpush1.msra.mxu0 0.0
        %971 = vmatprep.subr.mxu0 0.0
        %972 = vmatpush1.msra.mxu0 0.0
        %973 = vmatprep.subr.mxu0 0.0
        %974 = vmatpush1.msra.mxu0 0.0
        %975 = vmatprep.subr.mxu0 0.0
        %976 = vmatpush1.msra.mxu0 0.0
        %977 = vmatprep.subr.mxu0 0.0
        %978 = vmatpush1.msra.mxu0 0.0
        %979 = vmatprep.subr.mxu0 0.0
        %980 = vmatpush1.msra.mxu0 0.0
        %981 = vmatprep.subr.mxu0 0.0
        %982 = vmatpush1.msra.mxu0 0.0
        %983 = vmatprep.subr.mxu0 0.0
        %984 = vmatpush1.msra.mxu0 0.0
        %985 = vmatprep.subr.mxu0 0.0
        %986 = vmatpush1.msra.mxu0 0.0
        %987 = vmatprep.subr.mxu0 0.0
        %988 = vmatpush1.msra.mxu0 0.0
        %989 = vmatprep.subr.mxu0 0.0
        %990 = vmatpush1.msra.mxu0 0.0
        %991 = vmatprep.subr.mxu0 0.0
        %992 = vmatpush1.msra.mxu0 0.0
        %993 = vmatprep.subr.mxu0 0.0
        %994 = vmatpush1.msra.mxu0 0.0
        %995 = vmatprep.subr.mxu0 0.0
        %996 = vmatpush1.msra.mxu0 0.0
        %997 = vmatprep.subr.mxu0 0.0
        %998 = vmatpush1.msra.mxu0 0.0
        %999 = vmatprep.mubr.f32.mxu0 0.0
        %1000 = vmatmul.mubr.f32.gmra.mrb[0].mxu0 %v929
        %v1001 = vpop.f32.mrb[0].mxu0
        %v1002 = vadd.f32 %v915, %v1001
        %v1003 = vpop.f32.mrb[0].mxu0
        %v1004 = vadd.f32 %v917, %v1003
        %1005 = vdwg.mxu0
        %v1006 = vld [vmem:[%s235] sm:$0xff]
        %v1007 = vld [vmem:[%s235 + $0x8] sm:$0xf]
        %s1008 = scalar_lea.vmem %s1, 64
        %v1009 = vld [vmem:[%s1008] sm:$0xff]
        %v1012 = vcombine.high %v1006, %v1006
        %1013 = vrot.lane.b32.xlu0 %v1006, 94
        %v1014 = vpop.permute.xlu0 %1013
        %1015 = vrot.lane.b32.xlu0 %v1012, 94
        %v1016 = vpop.permute.xlu0 %1015
        %1017 = vrot.lane.b32.xlu0 %v1007, 94
        %v1018 = vpop.permute.xlu0 %1017
        %vm1019 = vcmask 769024
        %v1020 = vsel %vm1019, %v1014, %v1016
        %v1021 = vsel %vm1019, %v1016, %v1018
        %v1023 = vsel %vm257, %v1009, 0
        %v1025 = vsel %vm261, %v1020, 0
        %v1027 = vsel %vm261, %v1021, 0
        %1029 = vmatprep.subr.mxu0 %v1027
        %1030 = vmatpush1.msra.mxu0 %v1025
        %1031 = vmatprep.subr.mxu0 0.0
        %1032 = vmatpush1.msra.mxu0 0.0
        %1033 = vmatprep.subr.mxu0 0.0
        %1034 = vmatpush1.msra.mxu0 0.0
        %1035 = vmatprep.subr.mxu0 0.0
        %1036 = vmatpush1.msra.mxu0 0.0
        %1037 = vmatprep.subr.mxu0 0.0
        %1038 = vmatpush1.msra.mxu0 0.0
        %1039 = vmatprep.subr.mxu0 0.0
        %1040 = vmatpush1.msra.mxu0 0.0
        %1041 = vmatprep.subr.mxu0 0.0
        %1042 = vmatpush1.msra.mxu0 0.0
        %1043 = vmatprep.subr.mxu0 0.0
        %1044 = vmatpush1.msra.mxu0 0.0
        %1045 = vmatprep.subr.mxu0 0.0
        %1046 = vmatpush1.msra.mxu0 0.0
        %1047 = vmatprep.subr.mxu0 0.0
        %1048 = vmatpush1.msra.mxu0 0.0
        %1049 = vmatprep.subr.mxu0 0.0
        %1050 = vmatpush1.msra.mxu0 0.0
        %1051 = vmatprep.subr.mxu0 0.0
        %1052 = vmatpush1.msra.mxu0 0.0
        %1053 = vmatprep.subr.mxu0 0.0
        %1054 = vmatpush1.msra.mxu0 0.0
        %1055 = vmatprep.subr.mxu0 0.0
        %1056 = vmatpush1.msra.mxu0 0.0
        %1057 = vmatprep.subr.mxu0 0.0
        %1058 = vmatpush1.msra.mxu0 0.0
        %1059 = vmatprep.subr.mxu0 0.0
        %1060 = vmatpush1.msra.mxu0 0.0
        %1061 = vmatprep.subr.mxu0 0.0
        %1062 = vmatpush1.msra.mxu0 0.0
        %1063 = vmatprep.subr.mxu0 0.0
        %1064 = vmatpush1.msra.mxu0 0.0
        %1065 = vmatprep.subr.mxu0 0.0
        %1066 = vmatpush1.msra.mxu0 0.0
        %1067 = vmatprep.subr.mxu0 0.0
        %1068 = vmatpush1.msra.mxu0 0.0
        %1069 = vmatprep.subr.mxu0 0.0
        %1070 = vmatpush1.msra.mxu0 0.0
        %1071 = vmatprep.subr.mxu0 0.0
        %1072 = vmatpush1.msra.mxu0 0.0
        %1073 = vmatprep.subr.mxu0 0.0
        %1074 = vmatpush1.msra.mxu0 0.0
        %1075 = vmatprep.subr.mxu0 0.0
        %1076 = vmatpush1.msra.mxu0 0.0
        %1077 = vmatprep.subr.mxu0 0.0
        %1078 = vmatpush1.msra.mxu0 0.0
        %1079 = vmatprep.subr.mxu0 0.0
        %1080 = vmatpush1.msra.mxu0 0.0
        %1081 = vmatprep.subr.mxu0 0.0
        %1082 = vmatpush1.msra.mxu0 0.0
        %1083 = vmatprep.subr.mxu0 0.0
        %1084 = vmatpush1.msra.mxu0 0.0
        %1085 = vmatprep.subr.mxu0 0.0
        %1086 = vmatpush1.msra.mxu0 0.0
        %1087 = vmatprep.subr.mxu0 0.0
        %1088 = vmatpush1.msra.mxu0 0.0
        %1089 = vmatprep.subr.mxu0 0.0
        %1090 = vmatpush1.msra.mxu0 0.0
        %1091 = vmatprep.subr.mxu0 0.0
        %1092 = vmatpush1.msra.mxu0 0.0
        %1093 = vmatprep.mubr.f32.mxu0 0.0
        %1094 = vmatmul.mubr.f32.gmra.mrb[0].mxu0 %v1023
        %v1095 = vpop.f32.mrb[0].mxu0
        %v1096 = vadd.f32 0.0, %v1095
        %v1097 = vpop.f32.mrb[0].mxu0
        %v1098 = vadd.f32 0.0, %v1097
        %1099 = vdwg.mxu0
        %v1100 = vadd.f32 %v1002, %v1096
        %v1101 = vadd.f32 %v1004, %v1098
        %s1102 = scalar_lea.vmem %s2, 4
        %v1103 = vld [vmem:[%s1102] sm:$0x3]
        %v1105 = vlaneseq
        %v1106 = vshrl.u32 %v1105, 7
        %v1107 = vsub.s32 0, %v1106
        %v1108 = vrot.slane %v1103, %v1107
        %v1109 = vlaneseq
        %v1110 = vshrl.u32 %v1109, 7
        %v1111 = vsub.s32 1, %v1110
        %v1112 = vrot.slane %v1103, %v1111
        %v1115 = vmul.f32 %v1100, %v1108
        %v1116 = vmul.f32 %v1101, %v1112
        %v1117 = vadd.f32 %v821, %v1115
        %v1118 = vadd.f32 %v822, %v1116
        %v1119 = vld [vmem:[%s3] sm:$0xff]
        %1121 = vset.pattern.permute.xlu0 0
        %1122 = vperm.xlu0 %1121, %v1119
        %v1123 = vpop.permute.xlu0 %1122
        %v1125 = vadd.f32 %v1117, %v1123
        %v1126 = vadd.f32 %v1118, %v1123
        %v1127 = vmax.f32 %v1125, 0.0
        %v1128 = vmax.f32 %v1126, 0.0
        %v1129 = vld [vmem:[%s239] sm:$0xff]
        %1131 = vset.pattern.permute.xlu0 0
        %1132 = vperm.xlu0 %1131, %v1129
        %v1133 = vpop.permute.xlu0 %1132
        %v1135 = vmul.f32 %v1127, %v1133
        %v1136 = vmul.f32 %v1128, %v1133
        %1137 = vst [vmem:[%s230] sm:$0xff] %v1135
        %1138 = vst [vmem:[%s230 + $0x8] sm:$0xff] %v1136
        %s1139 = sand.u32 %s142, 1
        %s1140 = scalar_lea.sflag [#allocation3], %s1139
        %s1141 = sand.u32 %s142, 1
        %s1142 = smul.addr %s1141, 16
        %s1143 = scalar_lea.vmem [#allocation2], %s1142
        // Predicated region
        $region41: #{tpu_custom_call.1} parent=39 // pred_check
          %p1144 = pneg %p152
        $region42: #{tpu_custom_call.1} parent=39 // pred_check_branch
          %1146 = sbr.rel (%p1144) target = $region44
        $region43: #{tpu_custom_call.1} parent=39 // pred_region
          %s1148 = ssub.s32 256, 256
          %1149 = vsyncadd %s1140, %s1148
          %s1150 = smul.addr %s19, 2
          %s1151 = smul.addr %s1150, 128
          %s1152 = scalar_lea.hbm %s5, %s1151
          %s1154 = sshll.u32 %s1143, 4
          %s1155 = int_to_ptr.vmem [resolvable:$true] %s1154
          %1157 = dma.vmem_to_hbm [thread:$0]  %s1155, 256, %s1152, %s1140
        $region44: #{tpu_custom_call.1} parent=39 // pred_fallthru
          _
      $region40: #{tpu_custom_call.1} parent=5 // pred_fallthru
        _
      %p1158 = scmp.le.s32.totalorder 2, %s14
      // Predicated region
      $region45: #{tpu_custom_call.1} parent=5 // pred_check
        %p1159 = pneg %p1158
      $region46: #{tpu_custom_call.1} parent=5 // pred_check_branch
        %1161 = sbr.rel (%p1159) target = $region48
      $region47: #{tpu_custom_call.1} parent=5 // pred_region
        %s1162 = ssub.s32 %s14, 2
        // Predicated region
        $region49: #{tpu_custom_call.1} parent=47 // pred_check
          %p1163 = pneg %p158
        $region50: #{tpu_custom_call.1} parent=47 // pred_check_branch
          %1165 = sbr.rel (%p1163) target = $region52
        $region51: #{tpu_custom_call.1} parent=47 // pred_region
          %s1166 = sand.u32 %s143, 1
          %s1167 = scalar_lea.sflag [#allocation3], %s1166
          %s1168 = sand.u32 %s143, 1
          %s1169 = smul.addr %s1168, 16
          %s1170 = scalar_lea.vmem [#allocation2], %s1169
          %1171 = dma.done %s1167, 256
        $region52: #{tpu_custom_call.1} parent=47 // pred_fallthru
          _
      $region48: #{tpu_custom_call.1} parent=5 // pred_fallthru
        _
    $region6: #{tpu_custom_call.1} parent=1 // loop_footer
      %s18 = sadd.s32 1, %s14
    $region7: #{tpu_custom_call.1} parent=1 // loop_footer_branch
      %13 = sbr.rel target = $region3
    $region8: #{tpu_custom_call.1} parent=1 // loop_exit
      _
    %1172 = vsyncpa [#allocation3], 1
    %s1173 = scalar_lea.sflag [#allocation3], 1
    %1174 = vsyncpa %s1173, 1

</llo_original>
